<compile_context>
chip_gen: v5e
topology: v5e:2x2
jax: 0.10.0
libtpu: 0.0.40
codegen_flags: <defaults>
</compile_context>

<pallas_src>
import jax
import jax.numpy as jnp
from jax import lax
from jax.experimental import pallas as pl
from jax.experimental.pallas import tpu as pltpu


# ----------------------------------------------------------------------------- kernel


def _make_kernel(D, TD):
    """Kernel closure over static D / D-tile size (needed for ragged-D masking)."""
    ragged_d = (D % TD) != 0

    def kernel(x_ref, w_ref, b_ref, o_ref, acc_ref):
        # x_ref: (TB, TD) VMEM (input dtype)   w_ref: (1, TD) VMEM
        # b_ref: (1,) SMEM                     o_ref: (1, TB) VMEM (lane-dense row)
        # acc_ref: (1, TB) f32 VMEM scratch, resident across the reduction axis
        k = pl.program_id(1)

        @pl.when(k == 0)
        def _init():
            acc_ref[...] = jnp.zeros_like(acc_ref)

        x = x_ref[...].astype(jnp.float32)      # per-tile upcast (bf16 streams at half bytes)
        w = w_ref[...].astype(jnp.float32)      # (1, TD) broadcasts over sublanes
        prod = x * w                            # (TB, TD) on the VPU
        if ragged_d:
            # Final reduction tile runs past D: zero out-of-bounds columns so
            # undefined data cannot corrupt the row sums.
            col = lax.broadcasted_iota(jnp.int32, prod.shape, 1) + k * TD
            prod = jnp.where(col < D, prod, 0.0)
        # XLU lane reduce + sublane->lane relayout; hidden under the tile DMA.
        acc_ref[0, :] += jnp.sum(prod, axis=-1)

        @pl.when(k == pl.num_programs(1) - 1)
        def _store():
            o_ref[0, :] = (acc_ref[0, :] + b_ref[0]).astype(o_ref.dtype)

    return kernel


# ----------------------------------------------------------------------------- sizing


def _round_up(n, m):
    return ((n + m - 1) // m) * m


def _vmem_capacity_bytes():
    """Physical VMEM per core (128 MiB v5e/v6e, 64 MiB v7x); conservative fallback."""
    try:
        cap = int(getattr(pltpu.get_tpu_info(), "vmem_capacity_bytes"))
        if cap > 0:
            return cap
    except Exception:
        pass
    return 64 * 1024 * 1024  # v7x-safe default


def _pick_tiles(B, D, in_itemsize, x_budget):
    """Pick (TB, TD): batch tile (multiple of 128) and D tile (multiple of 128 or D)."""
    b_pad = _round_up(max(B, 1), 128)

    # Start at the HBM-roofline plateau; never bigger than the padded batch.
    tb = min(1024, b_pad)
    # Make sure the "parallel" batch axis has >= 2 tiles so both v7x TensorCores
    # get work (negligible cost on single-TC generations).
    while tb > 128 and pl.cdiv(B, tb) < 2:
        tb = max(128, _round_up(tb // 2, 128))
    # Safety: even a 128-wide D tile must fit the double-buffered budget.
    while tb > 128 and 2 * tb * min(D, 128) * in_itemsize > x_budget:
        tb = max(128, _round_up(tb // 2, 128))

    # D tile: full D if the double-buffered (tb, D) tile fits, else a multiple of 128
    # (reduction grid axis keeps TB on the plateau with bounded VMEM for huge D).
    if D <= 128 or 2 * tb * D * in_itemsize <= x_budget:
        td = D
    else:
        td = max(128, (x_budget // (2 * tb * in_itemsize) // 128) * 128)
    return tb, td


# ----------------------------------------------------------------------------- wrapper


def perceptron_forward(x, weight, bias, *, block_batch=None, block_dim=None,
                       force_pallas=False):
    """x: (B, D), weight: (1, D) (PyTorch nn.Linear layout), bias: (1,) -> (B, 1)."""
    x = jnp.asarray(x)
    w = jnp.asarray(weight).reshape(1, -1)
    b = jnp.asarray(bias).reshape(1).astype(jnp.float32)
    B, D = x.shape
    out_dtype = jnp.promote_types(x.dtype, w.dtype)

    use_pallas = (force_pallas or block_batch is not None or block_dim is not None
                  or B * D * x.dtype.itemsize >= 512 * 1024)
    if not use_pallas:
        # Tiny problems: per-step (~0.35 us) + launch overhead dwarfs the HBM traffic.
        y = x.astype(jnp.float32) @ w.astype(jnp.float32).T + b.reshape(1, 1)
        return y.astype(out_dtype)

    vmem_cap = _vmem_capacity_bytes()
    x_budget = (vmem_cap * 9) // 16            # ~56% of VMEM for the double-buffered x tile
    tb, td = _pick_tiles(B, D, x.dtype.itemsize, x_budget)
    if block_batch is not None:
        tb = int(block_batch)
    if block_dim is not None:
        td = int(block_dim)
    assert tb % 128 == 0, "batch tile must be a multiple of 128 (lane-dense output)"
    assert td == D or td % 128 == 0, "D tile must be a multiple of 128 or the full D"

    G = pl.cdiv(B, tb)
    K = pl.cdiv(D, td)

    # Raise the scoped VMEM limit to cover the actual footprint (capped at physical).
    # NOTE: the weight tile could be single-buffered (its block index is constant
    # per k) to save td*itemsize bytes for very large D; not needed here.
    est = (2 * tb * td * x.dtype.itemsize          # double-buffered x tile
           + 2 * td * w.dtype.itemsize             # double-buffered weight tile
           + 2 * tb * jnp.dtype(out_dtype).itemsize
           + tb * 4)                               # f32 accumulator scratch
    vmem_limit = int(min(vmem_cap, max(est + (8 << 20), 32 << 20)))

    out_row = pl.pallas_call(
        _make_kernel(D, td),
        out_shape=jax.ShapeDtypeStruct((1, G * tb), out_dtype),
        grid_spec=pltpu.PrefetchScalarGridSpec(
            num_scalar_prefetch=0,
            grid=(G, K),
            in_specs=[
                pl.BlockSpec((tb, td), lambda i, k: (i, k)),            # stream x tiles
                pl.BlockSpec((1, td), lambda i, k: (0, k)),             # weight tile per k
                pl.BlockSpec(memory_space=pltpu.MemorySpace.SMEM),      # bias scalar
            ],
            out_specs=pl.BlockSpec((1, tb), lambda i, k: (0, i)),       # lane-dense output row
            scratch_shapes=[pltpu.VMEM((1, tb), jnp.float32)],          # f32 accumulator
        ),
        compiler_params=pltpu.CompilerParams(
            dimension_semantics=("parallel", "arbitrary"),
            vmem_limit_bytes=vmem_limit,
        ),
    )(x, w, b)

    # No input padding was done: rows >= B of the last tile held undefined data,
    # but they only produced output elements that are sliced off here.
    return out_row.reshape(G * tb, 1)[:B]


# ----------------------------------------------------------------------------- tests


if __name__ == "__main__":
    key = jax.random.PRNGKey(0)
    kx1, kw, kb, kx2, kx3 = jax.random.split(key, 5)
    HI = lax.Precision.HIGHEST

    # Case 1: small Perceptron(input_dim=32) batch, forced down the Pallas path.
    B1, D1 = 8, 32
    x1 = jax.random.normal(kx1, (B1, D1), dtype=jnp.float32)
    bd1 = 1.0 / (D1 ** 0.5)
    w1 = jax.random.uniform(kw, (1, D1), minval=-bd1, maxval=bd1, dtype=jnp.float32)
    b1 = jax.random.uniform(kb, (1,), minval=-bd1, maxval=bd1, dtype=jnp.float32)
    out1 = perceptron_forward(x1, w1, b1, force_pallas=True)
    jax.block_until_ready(out1)
    ref1 = jnp.matmul(x1, w1.T, precision=HI) + b1
    assert out1.shape == (B1, 1)
    assert jnp.allclose(out1, ref1, atol=1e-5), "mismatch vs reference (small case)"

    # Case 2: ragged batch (B % TB != 0) with NO wrapper-side padding; multi-tile grid.
    B2, D2 = 300, 128
    x2 = jax.random.normal(kx2, (B2, D2), dtype=jnp.float32)
    bd2 = 1.0 / (D2 ** 0.5)
    w2 = jax.random.uniform(kw, (1, D2), minval=-bd2, maxval=bd2, dtype=jnp.float32)
    b2 = jax.random.uniform(kb, (1,), minval=-bd2, maxval=bd2, dtype=jnp.float32)
    out2 = perceptron_forward(x2, w2, b2, block_batch=128, force_pallas=True)
    jax.block_until_ready(out2)
    ref2 = jnp.matmul(x2, w2.T, precision=HI) + b2
    assert out2.shape == (B2, 1)
    assert jnp.allclose(out2, ref2, atol=1e-5), "mismatch vs reference (ragged batch)"

    # Case 3: D-tiled reduction grid (K=2) with a ragged final D tile (mask path).
    B3, D3 = 300, 200
    x3 = jax.random.normal(kx3, (B3, D3), dtype=jnp.float32)
    bd3 = 1.0 / (D3 ** 0.5)
    w3 = jax.random.uniform(kw, (1, D3), minval=-bd3, maxval=bd3, dtype=jnp.float32)
    b3 = jax.random.uniform(kb, (1,), minval=-bd3, maxval=bd3, dtype=jnp.float32)
    out3 = perceptron_forward(x3, w3, b3, block_batch=128, block_dim=128,
                              force_pallas=True)
    jax.block_until_ready(out3)
    ref3 = jnp.matmul(x3, w3.T, precision=HI) + b3
    assert out3.shape == (B3, 1)
    assert jnp.allclose(out3, ref3, atol=2e-5), "mismatch vs reference (D-tiled case)"

    # Case 4: small-problem auto-dispatch (plain XLA dot fallback).
    out4 = perceptron_forward(x1, w1, b1)
    jax.block_until_ready(out4)
    assert jnp.allclose(out4, ref1, atol=1e-5), "mismatch vs reference (XLA fallback)"

    print("KERNEL_OK")
</pallas_src>

<mosaic_0001>
module attributes {stable_mosaic.version = 11 : i64} {
  func.func @kernel(%arg0: i32, %arg1: i32, %arg2: memref<128x32xf32, #tpu.memory_space<vmem>>, %arg3: memref<1x32xf32, #tpu.memory_space<vmem>>, %arg4: memref<1xf32, #tpu.memory_space<smem>>, %arg5: memref<1x128xf32, #tpu.memory_space<vmem>>, %arg6: memref<1x128xf32, #tpu.memory_space<vmem>>) attributes {dimension_semantics = [#tpu.dimension_semantics<parallel>, #tpu.dimension_semantics<arbitrary>], iteration_bounds = array<i64: 1, 1>, scalar_prefetch = 0 : i64, scratch_operands = 1 : i64, tpu.core_type = #tpu.core_type<tc>, window_params = [{transform_indices = @transform_0, window_bounds = array<i64: 128, 32>}, {transform_indices = @transform_1, window_bounds = array<i64: 1, 32>}, {transform_indices = @transform_2, window_bounds = array<i64: 1>}, {transform_indices = @transform_3, window_bounds = array<i64: 1, 128>}]} {
    %c0_i32 = arith.constant 0 : i32
    %0 = arith.cmpi eq, %arg1, %c0_i32 : i32
    %1 = arith.extui %0 : i1 to i32
    %c0_i32_0 = arith.constant 0 : i32
    %2 = arith.cmpi ne, %1, %c0_i32_0 : i32
    scf.if %2 {
      %cst_10 = arith.constant 0.000000e+00 : f32
      %17 = vector.broadcast %cst_10 : f32 to vector<1x128xf32>
      %c0_11 = arith.constant 0 : index
      %c0_12 = arith.constant 0 : index
      %18 = vector.load %arg6[%c0_11, %c0_12] : memref<1x128xf32, #tpu.memory_space<vmem>>, vector<1x128xf32>
      tpu.vector_store %arg6[%c0_11, %c0_12], %17 {strides = array<i32>} : memref<1x128xf32, #tpu.memory_space<vmem>>, vector<1x128xf32>,
    } else {
    }
    %c0 = arith.constant 0 : index
    %c0_1 = arith.constant 0 : index
    %3 = vector.load %arg2[%c0, %c0_1] : memref<128x32xf32, #tpu.memory_space<vmem>>, vector<128x32xf32>
    %c0_2 = arith.constant 0 : index
    %c0_3 = arith.constant 0 : index
    %4 = vector.load %arg3[%c0_2, %c0_3] : memref<1x32xf32, #tpu.memory_space<vmem>>, vector<1x32xf32>
    %5 = vector.broadcast %4 : vector<1x32xf32> to vector<128x32xf32>
    %6 = arith.mulf %3, %5 : vector<128x32xf32>
    %c0_4 = arith.constant 0 : index
    %c0_5 = arith.constant 0 : index
    %7 = vector.load %arg6[%c0_4, %c0_5] : memref<1x128xf32, #tpu.memory_space<vmem>>, vector<1x128xf32>
    %8 = vector.shape_cast %7 : vector<1x128xf32> to vector<128xf32>
    %cst = arith.constant dense<0.000000e+00> : vector<128xf32>
    %9 = vector.multi_reduction <add>, %6, %cst [1] : vector<128x32xf32> to vector<128xf32>
    %10 = arith.addf %8, %9 : vector<128xf32>
    %c0_6 = arith.constant 0 : index
    %c0_7 = arith.constant 0 : index
    %11 = vector.load %arg6[%c0_6, %c0_7] : memref<1x128xf32, #tpu.memory_space<vmem>>, vector<1x128xf32>
    %12 = vector.shape_cast %11 : vector<1x128xf32> to vector<128xf32>
    %13 = vector.shape_cast %10 : vector<128xf32> to vector<1x128xf32>
    tpu.vector_store %arg6[%c0_6, %c0_7], %13 {strides = array<i32>} : memref<1x128xf32, #tpu.memory_space<vmem>>, vector<1x128xf32>,
    %c0_i32_8 = arith.constant 0 : i32
    %14 = arith.cmpi eq, %arg1, %c0_i32_8 : i32
    %15 = arith.extui %14 : i1 to i32
    %c0_i32_9 = arith.constant 0 : i32
    %16 = arith.cmpi ne, %15, %c0_i32_9 : i32
    scf.if %16 {
      %c0_10 = arith.constant 0 : index
      %c0_11 = arith.constant 0 : index
      %17 = vector.load %arg6[%c0_10, %c0_11] : memref<1x128xf32, #tpu.memory_space<vmem>>, vector<1x128xf32>
      %18 = vector.shape_cast %17 : vector<1x128xf32> to vector<128xf32>
      %c0_12 = arith.constant 0 : index
      %19 = memref.load %arg4[%c0_12] : memref<1xf32, #tpu.memory_space<smem>>
      %20 = vector.broadcast %19 : f32 to vector<128xf32>
      %21 = arith.addf %18, %20 : vector<128xf32>
      %c0_13 = arith.constant 0 : index
      %c0_14 = arith.constant 0 : index
      %22 = vector.load %arg5[%c0_13, %c0_14] : memref<1x128xf32, #tpu.memory_space<vmem>>, vector<1x128xf32>
      %23 = vector.shape_cast %22 : vector<1x128xf32> to vector<128xf32>
      %24 = vector.shape_cast %21 : vector<128xf32> to vector<1x128xf32>
      tpu.vector_store %arg5[%c0_13, %c0_14], %24 {strides = array<i32>} : memref<1x128xf32, #tpu.memory_space<vmem>>, vector<1x128xf32>,
    } else {
    }
    return
  }
  func.func @transform_0(%arg0: i32, %arg1: i32) -> (i32, i32) {
    %c0_i32 = arith.constant 0 : i32
    return %arg0, %arg1 : i32, i32
  }
  func.func @transform_1(%arg0: i32, %arg1: i32) -> (i32, i32) {
    %c0_i32 = arith.constant 0 : i32
    %c0_i32_0 = arith.constant 0 : i32
    return %c0_i32, %arg1 : i32, i32
  }
  func.func @transform_2(%arg0: i32, %arg1: i32) -> i32 {
    %c0_i32 = arith.constant 0 : i32
    %c0_i32_0 = arith.constant 0 : i32
    return %c0_i32 : i32
  }
  func.func @transform_3(%arg0: i32, %arg1: i32) -> (i32, i32) {
    %c0_i32 = arith.constant 0 : i32
    %c0_i32_0 = arith.constant 0 : i32
    return %c0_i32, %arg0 : i32, i32
  }
}

</mosaic_0001>

<llo_original>
// kernel: tpu_custom_call.1
$region0: #{tpu_custom_call.1}
  #allocation0 [shape = 'u32[]', space=smem, size = 0x4, offset = 0x4, fixed_abs, tag = 'smem constant byte address 0x4 - core index']
  #allocation1 [shape = 'u32[72,128]{1,0:T(1,128)}', space=vmem, size = 0x9000, scoped, tag = 'internal scratch']
  #allocation2 [shape = 'f32[1,128]{1,0:T(1,128)}', space=vmem, size = 0x200, scoped, tag = 'scratch operand']
  #allocation3 [shape = 'f32[1]{0:T(128)S(6)}', space=smem, size = 0x200, scoped, tag = 'scoped memory for tpu_custom_call.1']
  %s0 = inlined_call_operand.hbm [shape: f32[8,32], index: 0, kind: input, shape index: {}]
  %s1 = inlined_call_operand.vmem [shape: f32[1,32], index: 1, kind: input, shape index: {}]
  %s2 = inlined_call_operand.<no memory space> [shape: f32[1], index: 2, kind: input, shape index: {}]
  %s3 = inlined_call_operand.hbm [shape: f32[1,128], index: 3, kind: output, shape index: {}]
  %s4 = sld [smem:[#allocation0]]
  $region34: #{tpu_custom_call.1} parent=0
    _
  %s6 = ssub.s32 1, %s4
  %s7 = scalar_select 0, %s6, %s4
  %8 = sst [smem:[#allocation3]] %s2
  $region1: #{tpu_custom_call.1} parent=0
    #allocation4 [shape = 'u8[65536]{0}', space=vmem, size = 0x10000, scoped, tag = 'input window, operand 0, single buffered']
    #allocation5 [shape = 's32[1]{0}', space=sflag, size = 0x4, scoped, tag = 'scoped memory for tpu_custom_call.1']
    #allocation6 [shape = 's32[1]{0}', space=sflag, size = 0x4, scoped, tag = 'scoped memory for tpu_custom_call.1']
    #allocation7 [shape = 'u8[512]{0}', space=vmem, size = 0x400, scoped, tag = 'output window, operand 0, single buffered']
    %9 = vsyncpa [#allocation5], 0
    %10 = vsyncpa [#allocation6], 0
    // Predicated region
    $region2: #{tpu_custom_call.1} parent=1 // pred_check
      _
    $region3: #{tpu_custom_call.1} parent=1 // pred_check_branch
      %12 = sbr.rel (0) target = $region5
    $region4: #{tpu_custom_call.1} parent=1 // pred_region
      %14 = vsyncadd [#allocation5], 1920
      %s15 = sshll.u32 %s0, 4
      %s16 = int_to_ptr.hbm [resolvable:$true] %s15
      %s17 = sshll.u32 [#allocation4], 4
      %s18 = int_to_ptr.vmem [resolvable:$true] %s17
      %23 = dma.hbm_to_vmem [thread:$0]  %s16, 128, %s18, [#allocation5], 128, 128, 8
    $region5: #{tpu_custom_call.1} parent=1 // pred_fallthru
      _
    // Predicated region
    $region6: #{tpu_custom_call.1} parent=1 // pred_check
      _
    $region7: #{tpu_custom_call.1} parent=1 // pred_check_branch
      %25 = sbr.rel (0) target = $region9
    $region8: #{tpu_custom_call.1} parent=1 // pred_region
      _
    $region9: #{tpu_custom_call.1} parent=1 // pred_fallthru
      _
    // Predicated region
    $region10: #{tpu_custom_call.1} parent=1 // pred_check
      _
    $region11: #{tpu_custom_call.1} parent=1 // pred_check_branch
      %27 = sbr.rel (0) target = $region13
    $region12: #{tpu_custom_call.1} parent=1 // pred_region
      _
    $region13: #{tpu_custom_call.1} parent=1 // pred_fallthru
      _
    // Predicated region
    $region14: #{tpu_custom_call.1} parent=1 // pred_check
      _
    $region15: #{tpu_custom_call.1} parent=1 // pred_check_branch
      %29 = sbr.rel (0) target = $region17
    $region16: #{tpu_custom_call.1} parent=1 // pred_region
      %31 = dma.done [#allocation5], 2048
    $region17: #{tpu_custom_call.1} parent=1 // pred_fallthru
      _
    %p32 = scmp.eq.s32.totalorder 0, 0
    // Predicated region
    $region18: #{tpu_custom_call.1} parent=1 // pred_check
      %p33 = pneg %p32
    $region19: #{tpu_custom_call.1} parent=1 // pred_check_branch
      %35 = sbr.rel (%p33) target = $region21
    $region20: #{tpu_custom_call.1} parent=1 // pred_region
      %36 = vst [vmem:[#allocation2] sm:$0x1] 0.0
    $region21: #{tpu_custom_call.1} parent=1 // pred_fallthru
      _
    %v37 = vld [vmem:[#allocation4] sm:$0xff]
    %v38 = vld [vmem:[#allocation4 + $0x8] sm:$0xff]
    %v39 = vld [vmem:[#allocation4 + $0x10] sm:$0xff]
    %v40 = vld [vmem:[#allocation4 + $0x18] sm:$0xff]
    %v41 = vld [vmem:[#allocation4 + $0x20] sm:$0xff]
    %v42 = vld [vmem:[#allocation4 + $0x28] sm:$0xff]
    %v43 = vld [vmem:[#allocation4 + $0x30] sm:$0xff]
    %v44 = vld [vmem:[#allocation4 + $0x38] sm:$0xff]
    %v45 = vld [vmem:[#allocation4 + $0x40] sm:$0xff]
    %v46 = vld [vmem:[#allocation4 + $0x48] sm:$0xff]
    %v47 = vld [vmem:[#allocation4 + $0x50] sm:$0xff]
    %v48 = vld [vmem:[#allocation4 + $0x58] sm:$0xff]
    %v49 = vld [vmem:[#allocation4 + $0x60] sm:$0xff]
    %v50 = vld [vmem:[#allocation4 + $0x68] sm:$0xff]
    %v51 = vld [vmem:[#allocation4 + $0x70] sm:$0xff]
    %v52 = vld [vmem:[#allocation4 + $0x78] sm:$0xff]
    %v53 = vld [vmem:[%s1] sm:$0x1]
    %v55 = vperm.slane %v53, 0
    %v57 = vmul.f32 %v37, %v55
    %v58 = vmul.f32 %v38, %v55
    %v59 = vmul.f32 %v39, %v55
    %v60 = vmul.f32 %v40, %v55
    %v61 = vmul.f32 %v41, %v55
    %v62 = vmul.f32 %v42, %v55
    %v63 = vmul.f32 %v43, %v55
    %v64 = vmul.f32 %v44, %v55
    %v65 = vmul.f32 %v45, %v55
    %v66 = vmul.f32 %v46, %v55
    %v67 = vmul.f32 %v47, %v55
    %v68 = vmul.f32 %v48, %v55
    %v69 = vmul.f32 %v49, %v55
    %v70 = vmul.f32 %v50, %v55
    %v71 = vmul.f32 %v51, %v55
    %v72 = vmul.f32 %v52, %v55
    %v73 = vld [vmem:[#allocation2] sm:$0x1]
    %vm74 = vcmask 261120
    %v75 = vsel %vm74, %v57, 0.0
    %76 = vadd.xlane.f32.xlu0 %v75
    %v77 = vpop.xlane.xlu0 %76
    %v78 = vsel %vm74, %v58, 0.0
    %79 = vadd.xlane.f32.xlu0 %v78
    %v80 = vpop.xlane.xlu0 %79
    %v81 = vsel %vm74, %v59, 0.0
    %82 = vadd.xlane.f32.xlu0 %v81
    %v83 = vpop.xlane.xlu0 %82
    %v84 = vsel %vm74, %v60, 0.0
    %85 = vadd.xlane.f32.xlu0 %v84
    %v86 = vpop.xlane.xlu0 %85
    %v87 = vsel %vm74, %v61, 0.0
    %88 = vadd.xlane.f32.xlu0 %v87
    %v89 = vpop.xlane.xlu0 %88
    %v90 = vsel %vm74, %v62, 0.0
    %91 = vadd.xlane.f32.xlu0 %v90
    %v92 = vpop.xlane.xlu0 %91
    %v93 = vsel %vm74, %v63, 0.0
    %94 = vadd.xlane.f32.xlu0 %v93
    %v95 = vpop.xlane.xlu0 %94
    %v96 = vsel %vm74, %v64, 0.0
    %97 = vadd.xlane.f32.xlu0 %v96
    %v98 = vpop.xlane.xlu0 %97
    %v99 = vsel %vm74, %v65, 0.0
    %100 = vadd.xlane.f32.xlu0 %v99
    %v101 = vpop.xlane.xlu0 %100
    %v102 = vsel %vm74, %v66, 0.0
    %103 = vadd.xlane.f32.xlu0 %v102
    %v104 = vpop.xlane.xlu0 %103
    %v105 = vsel %vm74, %v67, 0.0
    %106 = vadd.xlane.f32.xlu0 %v105
    %v107 = vpop.xlane.xlu0 %106
    %v108 = vsel %vm74, %v68, 0.0
    %109 = vadd.xlane.f32.xlu0 %v108
    %v110 = vpop.xlane.xlu0 %109
    %v111 = vsel %vm74, %v69, 0.0
    %112 = vadd.xlane.f32.xlu0 %v111
    %v113 = vpop.xlane.xlu0 %112
    %v114 = vsel %vm74, %v70, 0.0
    %115 = vadd.xlane.f32.xlu0 %v114
    %v116 = vpop.xlane.xlu0 %115
    %v117 = vsel %vm74, %v71, 0.0
    %118 = vadd.xlane.f32.xlu0 %v117
    %v119 = vpop.xlane.xlu0 %118
    %v120 = vsel %vm74, %v72, 0.0
    %121 = vadd.xlane.f32.xlu0 %v120
    %v122 = vpop.xlane.xlu0 %121
    %v139 = vperm.slane %v77, 0
    %v140 = vperm.slane %v77, 1
    %v141 = vperm.slane %v77, 2
    %v142 = vperm.slane %v77, 3
    %v143 = vperm.slane %v77, 4
    %v144 = vperm.slane %v77, 5
    %v145 = vperm.slane %v77, 6
    %v146 = vperm.slane %v77, 7
    %v147 = vperm.slane %v80, 0
    %v148 = vperm.slane %v80, 1
    %v149 = vperm.slane %v80, 2
    %v150 = vperm.slane %v80, 3
    %v151 = vperm.slane %v80, 4
    %v152 = vperm.slane %v80, 5
    %v153 = vperm.slane %v80, 6
    %v154 = vperm.slane %v80, 7
    %v155 = vperm.slane %v83, 0
    %v156 = vperm.slane %v83, 1
    %v157 = vperm.slane %v83, 2
    %v158 = vperm.slane %v83, 3
    %v159 = vperm.slane %v83, 4
    %v160 = vperm.slane %v83, 5
    %v161 = vperm.slane %v83, 6
    %v162 = vperm.slane %v83, 7
    %v163 = vperm.slane %v86, 0
    %v164 = vperm.slane %v86, 1
    %v165 = vperm.slane %v86, 2
    %v166 = vperm.slane %v86, 3
    %v167 = vperm.slane %v86, 4
    %v168 = vperm.slane %v86, 5
    %v169 = vperm.slane %v86, 6
    %v170 = vperm.slane %v86, 7
    %v171 = vperm.slane %v89, 0
    %v172 = vperm.slane %v89, 1
    %v173 = vperm.slane %v89, 2
    %v174 = vperm.slane %v89, 3
    %v175 = vperm.slane %v89, 4
    %v176 = vperm.slane %v89, 5
    %v177 = vperm.slane %v89, 6
    %v178 = vperm.slane %v89, 7
    %v179 = vperm.slane %v92, 0
    %v180 = vperm.slane %v92, 1
    %v181 = vperm.slane %v92, 2
    %v182 = vperm.slane %v92, 3
    %v183 = vperm.slane %v92, 4
    %v184 = vperm.slane %v92, 5
    %v185 = vperm.slane %v92, 6
    %v186 = vperm.slane %v92, 7
    %v187 = vperm.slane %v95, 0
    %v188 = vperm.slane %v95, 1
    %v189 = vperm.slane %v95, 2
    %v190 = vperm.slane %v95, 3
    %v191 = vperm.slane %v95, 4
    %v192 = vperm.slane %v95, 5
    %v193 = vperm.slane %v95, 6
    %v194 = vperm.slane %v95, 7
    %v195 = vperm.slane %v98, 0
    %v196 = vperm.slane %v98, 1
    %v197 = vperm.slane %v98, 2
    %v198 = vperm.slane %v98, 3
    %v199 = vperm.slane %v98, 4
    %v200 = vperm.slane %v98, 5
    %v201 = vperm.slane %v98, 6
    %v202 = vperm.slane %v98, 7
    %v203 = vperm.slane %v101, 0
    %v204 = vperm.slane %v101, 1
    %v205 = vperm.slane %v101, 2
    %v206 = vperm.slane %v101, 3
    %v207 = vperm.slane %v101, 4
    %v208 = vperm.slane %v101, 5
    %v209 = vperm.slane %v101, 6
    %v210 = vperm.slane %v101, 7
    %v211 = vperm.slane %v104, 0
    %v212 = vperm.slane %v104, 1
    %v213 = vperm.slane %v104, 2
    %v214 = vperm.slane %v104, 3
    %v215 = vperm.slane %v104, 4
    %v216 = vperm.slane %v104, 5
    %v217 = vperm.slane %v104, 6
    %v218 = vperm.slane %v104, 7
    %v219 = vperm.slane %v107, 0
    %v220 = vperm.slane %v107, 1
    %v221 = vperm.slane %v107, 2
    %v222 = vperm.slane %v107, 3
    %v223 = vperm.slane %v107, 4
    %v224 = vperm.slane %v107, 5
    %v225 = vperm.slane %v107, 6
    %v226 = vperm.slane %v107, 7
    %v227 = vperm.slane %v110, 0
    %v228 = vperm.slane %v110, 1
    %v229 = vperm.slane %v110, 2
    %v230 = vperm.slane %v110, 3
    %v231 = vperm.slane %v110, 4
    %v232 = vperm.slane %v110, 5
    %v233 = vperm.slane %v110, 6
    %v234 = vperm.slane %v110, 7
    %v235 = vperm.slane %v113, 0
    %v236 = vperm.slane %v113, 1
    %v237 = vperm.slane %v113, 2
    %v238 = vperm.slane %v113, 3
    %v239 = vperm.slane %v113, 4
    %v240 = vperm.slane %v113, 5
    %v241 = vperm.slane %v113, 6
    %v242 = vperm.slane %v113, 7
    %v243 = vperm.slane %v116, 0
    %v244 = vperm.slane %v116, 1
    %v245 = vperm.slane %v116, 2
    %v246 = vperm.slane %v116, 3
    %v247 = vperm.slane %v116, 4
    %v248 = vperm.slane %v116, 5
    %v249 = vperm.slane %v116, 6
    %v250 = vperm.slane %v116, 7
    %v251 = vperm.slane %v119, 0
    %v252 = vperm.slane %v119, 1
    %v253 = vperm.slane %v119, 2
    %v254 = vperm.slane %v119, 3
    %v255 = vperm.slane %v119, 4
    %v256 = vperm.slane %v119, 5
    %v257 = vperm.slane %v119, 6
    %v258 = vperm.slane %v119, 7
    %v259 = vperm.slane %v122, 0
    %v260 = vperm.slane %v122, 1
    %v261 = vperm.slane %v122, 2
    %v262 = vperm.slane %v122, 3
    %v263 = vperm.slane %v122, 4
    %v264 = vperm.slane %v122, 5
    %v265 = vperm.slane %v122, 6
    %v266 = vperm.slane %v122, 7
    %267 = vst [vmem:[#allocation1] ss:$9 sm:$0xff] %v139
    %s268 = scalar_lea.vmem [#allocation1], 1
    %269 = vst [vmem:[%s268] ss:$9 sm:$0xff] %v140
    %s270 = scalar_lea.vmem [#allocation1], 2
    %271 = vst [vmem:[%s270] ss:$9 sm:$0xff] %v141
    %s272 = scalar_lea.vmem [#allocation1], 3
    %273 = vst [vmem:[%s272] ss:$9 sm:$0xff] %v142
    %s274 = scalar_lea.vmem [#allocation1], 4
    %275 = vst [vmem:[%s274] ss:$9 sm:$0xff] %v143
    %s276 = scalar_lea.vmem [#allocation1], 5
    %277 = vst [vmem:[%s276] ss:$9 sm:$0xff] %v144
    %s278 = scalar_lea.vmem [#allocation1], 6
    %279 = vst [vmem:[%s278] ss:$9 sm:$0xff] %v145
    %s280 = scalar_lea.vmem [#allocation1], 7
    %281 = vst [vmem:[%s280] ss:$9 sm:$0xff] %v146
    %v282 = vld [vmem:[#allocation1] sm:$0xff]
    %283 = vst [vmem:[#allocation1] ss:$9 sm:$0xff] %v147
    %284 = vst [vmem:[%s268] ss:$9 sm:$0xff] %v148
    %285 = vst [vmem:[%s270] ss:$9 sm:$0xff] %v149
    %286 = vst [vmem:[%s272] ss:$9 sm:$0xff] %v150
    %287 = vst [vmem:[%s274] ss:$9 sm:$0xff] %v151
    %288 = vst [vmem:[%s276] ss:$9 sm:$0xff] %v152
    %289 = vst [vmem:[%s278] ss:$9 sm:$0xff] %v153
    %290 = vst [vmem:[%s280] ss:$9 sm:$0xff] %v154
    %v291 = vld [vmem:[#allocation1] sm:$0xff]
    %292 = vst [vmem:[#allocation1] ss:$9 sm:$0xff] %v155
    %293 = vst [vmem:[%s268] ss:$9 sm:$0xff] %v156
    %294 = vst [vmem:[%s270] ss:$9 sm:$0xff] %v157
    %295 = vst [vmem:[%s272] ss:$9 sm:$0xff] %v158
    %296 = vst [vmem:[%s274] ss:$9 sm:$0xff] %v159
    %297 = vst [vmem:[%s276] ss:$9 sm:$0xff] %v160
    %298 = vst [vmem:[%s278] ss:$9 sm:$0xff] %v161
    %299 = vst [vmem:[%s280] ss:$9 sm:$0xff] %v162
    %v300 = vld [vmem:[#allocation1] sm:$0xff]
    %301 = vst [vmem:[#allocation1] ss:$9 sm:$0xff] %v163
    %302 = vst [vmem:[%s268] ss:$9 sm:$0xff] %v164
    %303 = vst [vmem:[%s270] ss:$9 sm:$0xff] %v165
    %304 = vst [vmem:[%s272] ss:$9 sm:$0xff] %v166
    %305 = vst [vmem:[%s274] ss:$9 sm:$0xff] %v167
    %306 = vst [vmem:[%s276] ss:$9 sm:$0xff] %v168
    %307 = vst [vmem:[%s278] ss:$9 sm:$0xff] %v169
    %308 = vst [vmem:[%s280] ss:$9 sm:$0xff] %v170
    %v309 = vld [vmem:[#allocation1] sm:$0xff]
    %310 = vst [vmem:[#allocation1] ss:$9 sm:$0xff] %v171
    %311 = vst [vmem:[%s268] ss:$9 sm:$0xff] %v172
    %312 = vst [vmem:[%s270] ss:$9 sm:$0xff] %v173
    %313 = vst [vmem:[%s272] ss:$9 sm:$0xff] %v174
    %314 = vst [vmem:[%s274] ss:$9 sm:$0xff] %v175
    %315 = vst [vmem:[%s276] ss:$9 sm:$0xff] %v176
    %316 = vst [vmem:[%s278] ss:$9 sm:$0xff] %v177
    %317 = vst [vmem:[%s280] ss:$9 sm:$0xff] %v178
    %v318 = vld [vmem:[#allocation1] sm:$0xff]
    %319 = vst [vmem:[#allocation1] ss:$9 sm:$0xff] %v179
    %320 = vst [vmem:[%s268] ss:$9 sm:$0xff] %v180
    %321 = vst [vmem:[%s270] ss:$9 sm:$0xff] %v181
    %322 = vst [vmem:[%s272] ss:$9 sm:$0xff] %v182
    %323 = vst [vmem:[%s274] ss:$9 sm:$0xff] %v183
    %324 = vst [vmem:[%s276] ss:$9 sm:$0xff] %v184
    %325 = vst [vmem:[%s278] ss:$9 sm:$0xff] %v185
    %326 = vst [vmem:[%s280] ss:$9 sm:$0xff] %v186
    %v327 = vld [vmem:[#allocation1] sm:$0xff]
    %328 = vst [vmem:[#allocation1] ss:$9 sm:$0xff] %v187
    %329 = vst [vmem:[%s268] ss:$9 sm:$0xff] %v188
    %330 = vst [vmem:[%s270] ss:$9 sm:$0xff] %v189
    %331 = vst [vmem:[%s272] ss:$9 sm:$0xff] %v190
    %332 = vst [vmem:[%s274] ss:$9 sm:$0xff] %v191
    %333 = vst [vmem:[%s276] ss:$9 sm:$0xff] %v192
    %334 = vst [vmem:[%s278] ss:$9 sm:$0xff] %v193
    %335 = vst [vmem:[%s280] ss:$9 sm:$0xff] %v194
    %v336 = vld [vmem:[#allocation1] sm:$0xff]
    %337 = vst [vmem:[#allocation1] ss:$9 sm:$0xff] %v195
    %338 = vst [vmem:[%s268] ss:$9 sm:$0xff] %v196
    %339 = vst [vmem:[%s270] ss:$9 sm:$0xff] %v197
    %340 = vst [vmem:[%s272] ss:$9 sm:$0xff] %v198
    %341 = vst [vmem:[%s274] ss:$9 sm:$0xff] %v199
    %342 = vst [vmem:[%s276] ss:$9 sm:$0xff] %v200
    %343 = vst [vmem:[%s278] ss:$9 sm:$0xff] %v201
    %344 = vst [vmem:[%s280] ss:$9 sm:$0xff] %v202
    %v345 = vld [vmem:[#allocation1] sm:$0xff]
    %346 = vst [vmem:[#allocation1] ss:$9 sm:$0xff] %v203
    %347 = vst [vmem:[%s268] ss:$9 sm:$0xff] %v204
    %348 = vst [vmem:[%s270] ss:$9 sm:$0xff] %v205
    %349 = vst [vmem:[%s272] ss:$9 sm:$0xff] %v206
    %350 = vst [vmem:[%s274] ss:$9 sm:$0xff] %v207
    %351 = vst [vmem:[%s276] ss:$9 sm:$0xff] %v208
    %352 = vst [vmem:[%s278] ss:$9 sm:$0xff] %v209
    %353 = vst [vmem:[%s280] ss:$9 sm:$0xff] %v210
    %v354 = vld [vmem:[#allocation1] sm:$0xff]
    %355 = vst [vmem:[#allocation1] ss:$9 sm:$0xff] %v211
    %356 = vst [vmem:[%s268] ss:$9 sm:$0xff] %v212
    %357 = vst [vmem:[%s270] ss:$9 sm:$0xff] %v213
    %358 = vst [vmem:[%s272] ss:$9 sm:$0xff] %v214
    %359 = vst [vmem:[%s274] ss:$9 sm:$0xff] %v215
    %360 = vst [vmem:[%s276] ss:$9 sm:$0xff] %v216
    %361 = vst [vmem:[%s278] ss:$9 sm:$0xff] %v217
    %362 = vst [vmem:[%s280] ss:$9 sm:$0xff] %v218
    %v363 = vld [vmem:[#allocation1] sm:$0xff]
    %364 = vst [vmem:[#allocation1] ss:$9 sm:$0xff] %v219
    %365 = vst [vmem:[%s268] ss:$9 sm:$0xff] %v220
    %366 = vst [vmem:[%s270] ss:$9 sm:$0xff] %v221
    %367 = vst [vmem:[%s272] ss:$9 sm:$0xff] %v222
    %368 = vst [vmem:[%s274] ss:$9 sm:$0xff] %v223
    %369 = vst [vmem:[%s276] ss:$9 sm:$0xff] %v224
    %370 = vst [vmem:[%s278] ss:$9 sm:$0xff] %v225
    %371 = vst [vmem:[%s280] ss:$9 sm:$0xff] %v226
    %v372 = vld [vmem:[#allocation1] sm:$0xff]
    %373 = vst [vmem:[#allocation1] ss:$9 sm:$0xff] %v227
    %374 = vst [vmem:[%s268] ss:$9 sm:$0xff] %v228
    %375 = vst [vmem:[%s270] ss:$9 sm:$0xff] %v229
    %376 = vst [vmem:[%s272] ss:$9 sm:$0xff] %v230
    %377 = vst [vmem:[%s274] ss:$9 sm:$0xff] %v231
    %378 = vst [vmem:[%s276] ss:$9 sm:$0xff] %v232
    %379 = vst [vmem:[%s278] ss:$9 sm:$0xff] %v233
    %380 = vst [vmem:[%s280] ss:$9 sm:$0xff] %v234
    %v381 = vld [vmem:[#allocation1] sm:$0xff]
    %382 = vst [vmem:[#allocation1] ss:$9 sm:$0xff] %v235
    %383 = vst [vmem:[%s268] ss:$9 sm:$0xff] %v236
    %384 = vst [vmem:[%s270] ss:$9 sm:$0xff] %v237
    %385 = vst [vmem:[%s272] ss:$9 sm:$0xff] %v238
    %386 = vst [vmem:[%s274] ss:$9 sm:$0xff] %v239
    %387 = vst [vmem:[%s276] ss:$9 sm:$0xff] %v240
    %388 = vst [vmem:[%s278] ss:$9 sm:$0xff] %v241
    %389 = vst [vmem:[%s280] ss:$9 sm:$0xff] %v242
    %v390 = vld [vmem:[#allocation1] sm:$0xff]
    %391 = vst [vmem:[#allocation1] ss:$9 sm:$0xff] %v243
    %392 = vst [vmem:[%s268] ss:$9 sm:$0xff] %v244
    %393 = vst [vmem:[%s270] ss:$9 sm:$0xff] %v245
    %394 = vst [vmem:[%s272] ss:$9 sm:$0xff] %v246
    %395 = vst [vmem:[%s274] ss:$9 sm:$0xff] %v247
    %396 = vst [vmem:[%s276] ss:$9 sm:$0xff] %v248
    %397 = vst [vmem:[%s278] ss:$9 sm:$0xff] %v249
    %398 = vst [vmem:[%s280] ss:$9 sm:$0xff] %v250
    %v399 = vld [vmem:[#allocation1] sm:$0xff]
    %400 = vst [vmem:[#allocation1] ss:$9 sm:$0xff] %v251
    %401 = vst [vmem:[%s268] ss:$9 sm:$0xff] %v252
    %402 = vst [vmem:[%s270] ss:$9 sm:$0xff] %v253
    %403 = vst [vmem:[%s272] ss:$9 sm:$0xff] %v254
    %404 = vst [vmem:[%s274] ss:$9 sm:$0xff] %v255
    %405 = vst [vmem:[%s276] ss:$9 sm:$0xff] %v256
    %406 = vst [vmem:[%s278] ss:$9 sm:$0xff] %v257
    %407 = vst [vmem:[%s280] ss:$9 sm:$0xff] %v258
    %v408 = vld [vmem:[#allocation1] sm:$0xff]
    %409 = vst [vmem:[#allocation1] ss:$9 sm:$0xff] %v259
    %410 = vst [vmem:[%s268] ss:$9 sm:$0xff] %v260
    %411 = vst [vmem:[%s270] ss:$9 sm:$0xff] %v261
    %412 = vst [vmem:[%s272] ss:$9 sm:$0xff] %v262
    %413 = vst [vmem:[%s274] ss:$9 sm:$0xff] %v263
    %414 = vst [vmem:[%s276] ss:$9 sm:$0xff] %v264
    %415 = vst [vmem:[%s278] ss:$9 sm:$0xff] %v265
    %416 = vst [vmem:[%s280] ss:$9 sm:$0xff] %v266
    %v417 = vld [vmem:[#allocation1] sm:$0xff]
    %418 = vset.pattern.permute.xlu0 0
    %419 = vperm.xlu0 %418, %v282
    %v420 = vpop.permute.xlu0 %419
    %421 = vset.pattern.permute.xlu0 0
    %422 = vperm.xlu0 %421, %v291
    %v423 = vpop.permute.xlu0 %422
    %424 = vset.pattern.permute.xlu0 0
    %425 = vperm.xlu0 %424, %v300
    %v426 = vpop.permute.xlu0 %425
    %427 = vset.pattern.permute.xlu0 0
    %428 = vperm.xlu0 %427, %v309
    %v429 = vpop.permute.xlu0 %428
    %430 = vset.pattern.permute.xlu0 0
    %431 = vperm.xlu0 %430, %v318
    %v432 = vpop.permute.xlu0 %431
    %433 = vset.pattern.permute.xlu0 0
    %434 = vperm.xlu0 %433, %v327
    %v435 = vpop.permute.xlu0 %434
    %436 = vset.pattern.permute.xlu0 0
    %437 = vperm.xlu0 %436, %v336
    %v438 = vpop.permute.xlu0 %437
    %439 = vset.pattern.permute.xlu0 0
    %440 = vperm.xlu0 %439, %v345
    %v441 = vpop.permute.xlu0 %440
    %442 = vset.pattern.permute.xlu0 0
    %443 = vperm.xlu0 %442, %v354
    %v444 = vpop.permute.xlu0 %443
    %445 = vset.pattern.permute.xlu0 0
    %446 = vperm.xlu0 %445, %v363
    %v447 = vpop.permute.xlu0 %446
    %448 = vset.pattern.permute.xlu0 0
    %449 = vperm.xlu0 %448, %v372
    %v450 = vpop.permute.xlu0 %449
    %451 = vset.pattern.permute.xlu0 0
    %452 = vperm.xlu0 %451, %v381
    %v453 = vpop.permute.xlu0 %452
    %454 = vset.pattern.permute.xlu0 0
    %455 = vperm.xlu0 %454, %v390
    %v456 = vpop.permute.xlu0 %455
    %457 = vset.pattern.permute.xlu0 0
    %458 = vperm.xlu0 %457, %v399
    %v459 = vpop.permute.xlu0 %458
    %460 = vset.pattern.permute.xlu0 0
    %461 = vperm.xlu0 %460, %v408
    %v462 = vpop.permute.xlu0 %461
    %463 = vset.pattern.permute.xlu0 0
    %464 = vperm.xlu0 %463, %v417
    %v465 = vpop.permute.xlu0 %464
    %v466 = vlaneseq
    %v467 = vand.u32 %v466, 127
    %v468 = vperm.slane %v420, %v467
    %v469 = vadd.s32 %v467, 4294967288
    %v470 = vperm.slane %v423, %v469
    %vm471 = vcmask 130112
    %v472 = vsel %vm471, %v470, %v468
    %v473 = vadd.s32 %v467, 4294967280
    %v474 = vperm.slane %v426, %v473
    %vm475 = vcmask 195712
    %v476 = vsel %vm475, %v474, %v472
    %v477 = vadd.s32 %v467, 4294967272
    %v478 = vperm.slane %v429, %v477
    %vm479 = vcmask 261312
    %v480 = vsel %vm479, %v478, %v476
    %v481 = vadd.s32 %v467, 4294967264
    %v482 = vperm.slane %v432, %v481
    %vm483 = vcmask 326912
    %v484 = vsel %vm483, %v482, %v480
    %v485 = vadd.s32 %v467, 4294967256
    %v486 = vperm.slane %v435, %v485
    %vm487 = vcmask 392512
    %v488 = vsel %vm487, %v486, %v484
    %v489 = vadd.s32 %v467, 4294967248
    %v490 = vperm.slane %v438, %v489
    %vm491 = vcmask 458112
    %v492 = vsel %vm491, %v490, %v488
    %v493 = vadd.s32 %v467, 4294967240
    %v494 = vperm.slane %v441, %v493
    %vm495 = vcmask 523712
    %v496 = vsel %vm495, %v494, %v492
    %v497 = vadd.s32 %v467, 4294967232
    %v498 = vperm.slane %v444, %v497
    %vm499 = vcmask 589312
    %v500 = vsel %vm499, %v498, %v496
    %v501 = vadd.s32 %v467, 4294967224
    %v502 = vperm.slane %v447, %v501
    %vm503 = vcmask 654912
    %v504 = vsel %vm503, %v502, %v500
    %v505 = vadd.s32 %v467, 4294967216
    %v506 = vperm.slane %v450, %v505
    %vm507 = vcmask 720512
    %v508 = vsel %vm507, %v506, %v504
    %v509 = vadd.s32 %v467, 4294967208
    %v510 = vperm.slane %v453, %v509
    %vm511 = vcmask 786112
    %v512 = vsel %vm511, %v510, %v508
    %v513 = vadd.s32 %v467, 4294967200
    %v514 = vperm.slane %v456, %v513
    %vm515 = vcmask 851712
    %v516 = vsel %vm515, %v514, %v512
    %v517 = vadd.s32 %v467, 4294967192
    %v518 = vperm.slane %v459, %v517
    %vm519 = vcmask 917312
    %v520 = vsel %vm519, %v518, %v516
    %v521 = vadd.s32 %v467, 4294967184
    %v522 = vperm.slane %v462, %v521
    %vm523 = vcmask 982912
    %v524 = vsel %vm523, %v522, %v520
    %v525 = vadd.s32 %v467, 4294967176
    %v526 = vperm.slane %v465, %v525
    %vm527 = vcmask 1048512
    %v528 = vsel %vm527, %v526, %v524
    %v530 = vadd.f32 %v73, %v528
    %531 = vst [vmem:[#allocation2] sm:$0x1] %v530
    // Predicated region
    $region22: #{tpu_custom_call.1} parent=1 // pred_check
      %p532 = pneg %p32
    $region23: #{tpu_custom_call.1} parent=1 // pred_check_branch
      %534 = sbr.rel (%p532) target = $region25
    $region24: #{tpu_custom_call.1} parent=1 // pred_region
      %v535 = vld [vmem:[#allocation2] sm:$0x1]
      %s536 = sld [smem:[#allocation3]]
      %v537 = vstv %s536
      %v538 = vadd.f32 %v535, %v537
      %539 = vst [vmem:[#allocation7] sm:$0x1] %v538
    $region25: #{tpu_custom_call.1} parent=1 // pred_fallthru
      _
    // Predicated region
    $region26: #{tpu_custom_call.1} parent=1 // pred_check
      _
    $region27: #{tpu_custom_call.1} parent=1 // pred_check_branch
      %541 = sbr.rel (0) target = $region29
    $region28: #{tpu_custom_call.1} parent=1 // pred_region
      %543 = vsyncadd [#allocation6], 0
      %s545 = sshll.u32 [#allocation7], 4
      %s546 = int_to_ptr.vmem [resolvable:$true] %s545
      %s547 = sshll.u32 %s3, 4
      %s548 = int_to_ptr.hbm [resolvable:$true] %s547
      %550 = dma.vmem_to_hbm [thread:$0]  %s546, 16, %s548, [#allocation6]
    $region29: #{tpu_custom_call.1} parent=1 // pred_fallthru
      _
    // Predicated region
    $region30: #{tpu_custom_call.1} parent=1 // pred_check
      _
    $region31: #{tpu_custom_call.1} parent=1 // pred_check_branch
      %552 = sbr.rel (0) target = $region33
    $region32: #{tpu_custom_call.1} parent=1 // pred_region
      %554 = dma.done [#allocation6], 16
    $region33: #{tpu_custom_call.1} parent=1 // pred_fallthru
      _
    %555 = vsyncpa [#allocation5], 1
    %556 = vsyncpa [#allocation6], 1

</llo_original>
